<compile_context>
chip_gen: v7x
topology: tpu7x:2x2x1
jax: 0.10.0
libtpu: 0.0.40
codegen_flags: <defaults>
</compile_context>

<pallas_src>
import functools

import jax
import jax.numpy as jnp
from jax.experimental import pallas as pl
from jax.experimental.pallas import tpu as pltpu

_LANE = 128
_MXU_WIDTH = 256            # v6e / v7x MXU width (harmless zero-pad on v5e)
_MAX_TILE_B = 512           # amortizes per-grid-step overhead; ~10 MB VMEM worst case
_VMEM_LIMIT = 32 * 1024 * 1024  # explicit scoped-VMEM cap, safe on v5e/v6e/v7x


# ------------------------------ small helpers -------------------------------
def _round_up(x, m):
    return ((x + m - 1) // m) * m


def _choose_tile_b(b):
    # Block second-to-last dim must be divisible by 8 OR equal the full dim.
    if b <= _MAX_TILE_B:
        return b            # single batch tile (== full dim) -> always legal
    return _MAX_TILE_B      # 512 % 8 == 0; final block may be partial (safe:
                            # rows are independent, OOB writes are discarded)


def _pad_cols(x, cols):
    r, c = x.shape
    if c == cols:
        return x
    return jnp.pad(x, ((0, 0), (0, cols - c)))


# ----------------------------- Pallas kernels --------------------------------
def _mlp2_kernel(x_ref, w1_ref, b1_ref, w2_ref, b2_ref, o_ref):
    """o = relu(x @ w1 + b1) @ w2 + b2  (bf16 matmuls, f32 accumulation)."""
    x = x_ref[...].astype(jnp.bfloat16)
    h = jnp.dot(x, w1_ref[...], preferred_element_type=jnp.float32) + b1_ref[...]
    h = jnp.maximum(h, 0.0).astype(jnp.bfloat16)
    y = jnp.dot(h, w2_ref[...], preferred_element_type=jnp.float32) + b2_ref[...]
    o_ref[...] = y.astype(o_ref.dtype)


def _fused_ae_kernel(x_ref, ew1_ref, eb1_ref, ew2_ref, eb2_ref,
                     dw1_ref, db1_ref, dw2_ref, db2_ref, o_ref):
    """Fused autoencode: decoder(encoder(x)); latent never leaves vregs/VMEM."""
    x = x_ref[...].astype(jnp.bfloat16)
    h = jnp.dot(x, ew1_ref[...], preferred_element_type=jnp.float32) + eb1_ref[...]
    h = jnp.maximum(h, 0.0).astype(jnp.bfloat16)
    z = jnp.dot(h, ew2_ref[...], preferred_element_type=jnp.float32) + eb2_ref[...]
    z = z.astype(jnp.bfloat16)
    h2 = jnp.dot(z, dw1_ref[...], preferred_element_type=jnp.float32) + db1_ref[...]
    h2 = jnp.maximum(h2, 0.0).astype(jnp.bfloat16)
    y = jnp.dot(h2, dw2_ref[...], preferred_element_type=jnp.float32) + db2_ref[...]
    o_ref[...] = y.astype(o_ref.dtype)


# ------------------------------ kernel wrappers -------------------------------
def _const_spec(shape):
    # Whole weight/bias block, constant block index -> DMA'd once per launch,
    # resident in VMEM across all batch tiles.
    return pl.BlockSpec(shape, lambda i: (0, 0))


def _nbytes(*arrs):
    return int(sum(a.size * a.dtype.itemsize for a in arrs))


def _mlp2(x, w1, b1, w2, b2, out_dtype):
    """x: [B, Din] f32 (unpadded batch); weights bf16, biases f32 (1, N)."""
    b, d_in = x.shape
    hidden = w1.shape[1]
    d_out = w2.shape[1]
    tile_b = _choose_tile_b(b)
    grid = (pl.cdiv(b, tile_b),)
    flops = 2 * b * (d_in * hidden + hidden * d_out)
    bytes_accessed = (_nbytes(x, w1, b1, w2, b2)
                      + b * d_out * jnp.dtype(out_dtype).itemsize)
    return pl.pallas_call(
        _mlp2_kernel,
        out_shape=jax.ShapeDtypeStruct((b, d_out), out_dtype),
        grid_spec=pl.GridSpec(
            grid=grid,
            in_specs=[
                pl.BlockSpec((tile_b, d_in), lambda i: (i, 0)),
                _const_spec(w1.shape), _const_spec(b1.shape),
                _const_spec(w2.shape), _const_spec(b2.shape),
            ],
            out_specs=pl.BlockSpec((tile_b, d_out), lambda i: (i, 0)),
        ),
        compiler_params=pltpu.CompilerParams(
            dimension_semantics=("parallel",),
            vmem_limit_bytes=_VMEM_LIMIT,
        ),
        cost_estimate=pl.CostEstimate(
            flops=flops, transcendentals=0, bytes_accessed=bytes_accessed),
    )(x, w1, b1, w2, b2)


def _fused_autoencode(x, enc_params, dec_params):
    """x: [B, Din] f32 (unpadded); fused encoder+decoder in a single launch."""
    ew1, eb1, ew2, eb2 = enc_params
    dw1, db1, dw2, db2 = dec_params
    b, d_in = x.shape
    hidden = ew1.shape[1]
    latent_pad = ew2.shape[1]
    d_out = dw2.shape[1]
    tile_b = _choose_tile_b(b)
    grid = (pl.cdiv(b, tile_b),)
    flops = 2 * b * (d_in * hidden + hidden * latent_pad
                     + latent_pad * hidden + hidden * d_out)
    bytes_accessed = (_nbytes(x, ew1, eb1, ew2, eb2, dw1, db1, dw2, db2)
                      + b * d_out * jnp.dtype(jnp.bfloat16).itemsize)
    return pl.pallas_call(
        _fused_ae_kernel,
        out_shape=jax.ShapeDtypeStruct((b, d_out), jnp.bfloat16),
        grid_spec=pl.GridSpec(
            grid=grid,
            in_specs=[
                pl.BlockSpec((tile_b, d_in), lambda i: (i, 0)),
                _const_spec(ew1.shape), _const_spec(eb1.shape),
                _const_spec(ew2.shape), _const_spec(eb2.shape),
                _const_spec(dw1.shape), _const_spec(db1.shape),
                _const_spec(dw2.shape), _const_spec(db2.shape),
            ],
            out_specs=pl.BlockSpec((tile_b, d_out), lambda i: (i, 0)),
        ),
        compiler_params=pltpu.CompilerParams(
            dimension_semantics=("parallel",),
            vmem_limit_bytes=_VMEM_LIMIT,
        ),
        cost_estimate=pl.CostEstimate(
            flops=flops, transcendentals=0, bytes_accessed=bytes_accessed),
    )(x, ew1, eb1, ew2, eb2, dw1, db1, dw2, db2)


# --------------------------- parameter creation -------------------------------
def _pad2d(x, rows, cols):
    r, c = x.shape
    if r == rows and c == cols:
        return x
    return jnp.pad(x, ((0, rows - r), (0, cols - c)))


def _init_linear(key, fan_in, fan_out, fan_in_pad=None, fan_out_pad=None):
    fan_in_pad = fan_in if fan_in_pad is None else fan_in_pad
    fan_out_pad = fan_out if fan_out_pad is None else fan_out_pad
    kw, kb = jax.random.split(key)
    scale = 1.0 / float(fan_in) ** 0.5
    w = jax.random.uniform(kw, (fan_in, fan_out), jnp.float32, -scale, scale)
    b = jax.random.uniform(kb, (1, fan_out), jnp.float32, -scale, scale)
    # Zero-pad to lane/MXU-friendly sizes; weights bf16 (MXU-native), biases
    # f32 (added after the f32 accumulation).
    w = _pad2d(w, fan_in_pad, fan_out_pad).astype(jnp.bfloat16)
    b = _pad2d(b, 1, fan_out_pad)
    return w, b


def make_autoencoder_params(key, in_dim, hidden, latent):
    # Pad latent to the 256-wide MXU so the encoder-out / decoder-in matmuls
    # fill the array on v6e/v7x (also lane-dense output stores).
    latent_pad = _round_up(latent, _MXU_WIDTH)
    k1, k2, k3, k4 = jax.random.split(key, 4)
    enc_w1, enc_b1 = _init_linear(k1, in_dim, hidden)
    enc_w2, enc_b2 = _init_linear(k2, hidden, latent, fan_out_pad=latent_pad)
    dec_w1, dec_b1 = _init_linear(k3, latent, hidden, fan_in_pad=latent_pad)
    dec_w2, dec_b2 = _init_linear(k4, hidden, in_dim)
    return {
        "encoder": (enc_w1, enc_b1, enc_w2, enc_b2),
        "decoder": (dec_w1, dec_b1, dec_w2, dec_b2),
        "in_dim": in_dim,
        "latent_dim": latent,
        "latent_pad": latent_pad,
    }


# ---------------------------------- forward -----------------------------------
def autoencoder_forward(params, image_shape,
                        encode=None, decode=None, autoencode=None):
    """Mirrors AutoEncoder.forward dispatch semantics exactly."""
    _, C, H, W = image_shape
    d_in = params["in_dim"]
    latent = params["latent_dim"]
    latent_pad = params["latent_pad"]

    if encode is not None:
        b = encode.shape[0]
        x = encode.reshape(b, d_in)                       # metadata-only reshape
        z_pad = _mlp2(x, *params["encoder"], out_dtype=jnp.float32)
        return z_pad[:, :latent]                          # tiny column slice

    if decode is not None:
        b = decode.shape[0]
        z = _pad_cols(decode, latent_pad)                 # tiny (B x 256) pad
        y = _mlp2(z, *params["decoder"], out_dtype=jnp.bfloat16)
        return y.reshape(b, C, H, W)

    if autoencode is not None:
        b = autoencode.shape[0]
        x = autoencode.reshape(b, d_in)                   # metadata-only reshape
        y = _fused_autoencode(x, params["encoder"], params["decoder"])
        return y.reshape(b, C, H, W)

    return None


# ------------------------------ pure-JAX reference ----------------------------
def _ref_mlp2(x_bf16, w1, b1, w2, b2):
    h = jnp.dot(x_bf16, w1, preferred_element_type=jnp.float32) + b1
    h = jnp.maximum(h, 0.0).astype(jnp.bfloat16)
    return jnp.dot(h, w2, preferred_element_type=jnp.float32) + b2


def _reference_autoencode(params, x_nchw):
    b = x_nchw.shape[0]
    x = x_nchw.reshape(b, params["in_dim"]).astype(jnp.bfloat16)
    z = _ref_mlp2(x, *params["encoder"]).astype(jnp.bfloat16)
    y = _ref_mlp2(z, *params["decoder"])
    return y.reshape(x_nchw.shape)


# ------------------------------------ main ------------------------------------
if __name__ == "__main__":
    B, C, H, W = 2, 4, 16, 16
    IN_DIM = C * H * W          # 1024
    HIDDEN = 256
    LATENT = 64

    key = jax.random.PRNGKey(0)
    k_params, k_x, k_z = jax.random.split(key, 3)

    params = make_autoencoder_params(k_params, IN_DIM, HIDDEN, LATENT)

    x = jax.random.normal(k_x, (B, C, H, W), jnp.float32)
    z = jax.random.normal(k_z, (B, LATENT), jnp.float32)

    fwd = functools.partial(autoencoder_forward, params, (B, C, H, W))

    # encode path
    latent = jax.block_until_ready(fwd(encode=x))
    assert latent.shape == (B, LATENT), latent.shape
    assert latent.dtype == jnp.float32

    # decode path
    recon_from_z = jax.block_until_ready(fwd(decode=z))
    assert recon_from_z.shape == (B, C, H, W), recon_from_z.shape

    # autoencode path (fused 4-matmul kernel)
    recon = jax.block_until_ready(fwd(autoencode=x))
    assert recon.shape == (B, C, H, W), recon.shape

    # Consistency: fused autoencode == decoder(encoder(x)) composed of the
    # separate paths (both bf16-rounded latent, bf16 output).
    recon_composed = jax.block_until_ready(fwd(decode=latent))
    assert jnp.allclose(recon.astype(jnp.float32),
                        recon_composed.astype(jnp.float32),
                        atol=2e-2, rtol=2e-2)

    # Pure-JAX reference (same bf16 weights, f32 accumulation).
    x_flat_bf16 = x.reshape(B, IN_DIM).astype(jnp.bfloat16)
    latent_ref = _ref_mlp2(x_flat_bf16, *params["encoder"])[:, :LATENT]
    assert jnp.allclose(latent, latent_ref, atol=1e-2, rtol=1e-2)
    recon_ref = _reference_autoencode(params, x)
    assert jnp.allclose(recon.astype(jnp.float32),
                        recon_ref.astype(jnp.float32),
                        atol=3e-2, rtol=3e-2)

    print("KERNEL_OK")
</pallas_src>

<mosaic_0001>
module attributes {stable_mosaic.version = 11 : i64} {
  func.func @_mlp2_kernel(%arg0: i32, %arg1: memref<2x1024xf32, #tpu.memory_space<vmem>>, %arg2: memref<1024x256xbf16, #tpu.memory_space<vmem>>, %arg3: memref<1x256xf32, #tpu.memory_space<vmem>>, %arg4: memref<256x256xbf16, #tpu.memory_space<vmem>>, %arg5: memref<1x256xf32, #tpu.memory_space<vmem>>, %arg6: memref<2x256xf32, #tpu.memory_space<vmem>>) attributes {dimension_semantics = [#tpu.dimension_semantics<parallel>], iteration_bounds = array<i64: 1>, scalar_prefetch = 0 : i64, scratch_operands = 0 : i64, tpu.core_type = #tpu.core_type<tc>, window_params = [{transform_indices = @transform_0, window_bounds = array<i64: 2, 1024>}, {pipeline_mode = #tpu.pipeline_mode<synchronous>, transform_indices = @transform_1, window_bounds = array<i64: 1024, 256>}, {pipeline_mode = #tpu.pipeline_mode<synchronous>, transform_indices = @transform_2, window_bounds = array<i64: 1, 256>}, {pipeline_mode = #tpu.pipeline_mode<synchronous>, transform_indices = @transform_3, window_bounds = array<i64: 256, 256>}, {pipeline_mode = #tpu.pipeline_mode<synchronous>, transform_indices = @transform_4, window_bounds = array<i64: 1, 256>}, {transform_indices = @transform_5, window_bounds = array<i64: 2, 256>}]} {
    %c0 = arith.constant 0 : index
    %c0_0 = arith.constant 0 : index
    %0 = vector.load %arg1[%c0, %c0_0] : memref<2x1024xf32, #tpu.memory_space<vmem>>, vector<2x1024xf32>
    %1 = arith.truncf %0 : vector<2x1024xf32> to vector<2x1024xbf16>
    %c0_1 = arith.constant 0 : index
    %c0_2 = arith.constant 0 : index
    %2 = vector.load %arg2[%c0_1, %c0_2] : memref<1024x256xbf16, #tpu.memory_space<vmem>>, vector<1024x256xbf16>
    %cst = arith.constant dense<0.000000e+00> : vector<2x256xf32>
    %3 = tpu.matmul %1, %2, %cst {dimension_numbers = #tpu.dot_dimension_numbers<[1], [0], [0], [1], [0, 0, 1, 1], [], []>} : vector<2x1024xbf16>, vector<1024x256xbf16>, vector<2x256xf32> -> vector<2x256xf32>
    %c0_3 = arith.constant 0 : index
    %c0_4 = arith.constant 0 : index
    %4 = vector.load %arg3[%c0_3, %c0_4] : memref<1x256xf32, #tpu.memory_space<vmem>>, vector<1x256xf32>
    %5 = vector.broadcast %4 : vector<1x256xf32> to vector<2x256xf32>
    %6 = arith.addf %3, %5 : vector<2x256xf32>
    %cst_5 = arith.constant 0.000000e+00 : f32
    %7 = vector.broadcast %cst_5 : f32 to vector<2x256xf32>
    %8 = arith.maximumf %6, %7 : vector<2x256xf32>
    %9 = arith.truncf %8 : vector<2x256xf32> to vector<2x256xbf16>
    %c0_6 = arith.constant 0 : index
    %c0_7 = arith.constant 0 : index
    %10 = vector.load %arg4[%c0_6, %c0_7] : memref<256x256xbf16, #tpu.memory_space<vmem>>, vector<256x256xbf16>
    %cst_8 = arith.constant dense<0.000000e+00> : vector<2x256xf32>
    %11 = tpu.matmul %9, %10, %cst_8 {dimension_numbers = #tpu.dot_dimension_numbers<[1], [0], [0], [1], [0, 0, 1, 1], [], []>} : vector<2x256xbf16>, vector<256x256xbf16>, vector<2x256xf32> -> vector<2x256xf32>
    %c0_9 = arith.constant 0 : index
    %c0_10 = arith.constant 0 : index
    %12 = vector.load %arg5[%c0_9, %c0_10] : memref<1x256xf32, #tpu.memory_space<vmem>>, vector<1x256xf32>
    %13 = vector.broadcast %12 : vector<1x256xf32> to vector<2x256xf32>
    %14 = arith.addf %11, %13 : vector<2x256xf32>
    %c0_11 = arith.constant 0 : index
    %c0_12 = arith.constant 0 : index
    %15 = vector.load %arg6[%c0_11, %c0_12] : memref<2x256xf32, #tpu.memory_space<vmem>>, vector<2x256xf32>
    tpu.vector_store %arg6[%c0_11, %c0_12], %14 {strides = array<i32>} : memref<2x256xf32, #tpu.memory_space<vmem>>, vector<2x256xf32>,
    return
  }
  func.func @transform_0(%arg0: i32) -> (i32, i32) {
    %c0_i32 = arith.constant 0 : i32
    %c0_i32_0 = arith.constant 0 : i32
    return %arg0, %c0_i32 : i32, i32
  }
  func.func @transform_1(%arg0: i32) -> (i32, i32) {
    %c0_i32 = arith.constant 0 : i32
    %c0_i32_0 = arith.constant 0 : i32
    %c0_i32_1 = arith.constant 0 : i32
    return %c0_i32, %c0_i32_0 : i32, i32
  }
  func.func @transform_2(%arg0: i32) -> (i32, i32) {
    %c0_i32 = arith.constant 0 : i32
    %c0_i32_0 = arith.constant 0 : i32
    %c0_i32_1 = arith.constant 0 : i32
    return %c0_i32, %c0_i32_0 : i32, i32
  }
  func.func @transform_3(%arg0: i32) -> (i32, i32) {
    %c0_i32 = arith.constant 0 : i32
    %c0_i32_0 = arith.constant 0 : i32
    %c0_i32_1 = arith.constant 0 : i32
    return %c0_i32, %c0_i32_0 : i32, i32
  }
  func.func @transform_4(%arg0: i32) -> (i32, i32) {
    %c0_i32 = arith.constant 0 : i32
    %c0_i32_0 = arith.constant 0 : i32
    %c0_i32_1 = arith.constant 0 : i32
    return %c0_i32, %c0_i32_0 : i32, i32
  }
  func.func @transform_5(%arg0: i32) -> (i32, i32) {
    %c0_i32 = arith.constant 0 : i32
    %c0_i32_0 = arith.constant 0 : i32
    return %arg0, %c0_i32 : i32, i32
  }
}

</mosaic_0001>

<llo_original>
// kernel: tpu_custom_call.1
$region0: #{tpu_custom_call.1}
  #allocation0 [shape = 'u32[]', space=smem, size = 0x4, offset = 0x4, fixed_abs, tag = 'smem constant byte address 0x4 - core index']
  #allocation1 [shape = 'u32[144,128]{1,0:T(1,128)}', space=vmem, size = 0x12000, scoped, tag = 'internal scratch']
  %s0 = inlined_call_operand.hbm [shape: f32[2,1024], index: 0, kind: input, shape index: {}]
  %s1 = inlined_call_operand.hbm [shape: bf16[1024,256], index: 1, kind: input, shape index: {}]
  %s2 = inlined_call_operand.vmem [shape: f32[1,256], index: 2, kind: input, shape index: {}]
  %s3 = inlined_call_operand.hbm [shape: bf16[256,256], index: 3, kind: input, shape index: {}]
  %s4 = inlined_call_operand.vmem [shape: f32[1,256], index: 4, kind: input, shape index: {}]
  %s5 = inlined_call_operand.hbm [shape: f32[2,256], index: 5, kind: output, shape index: {}]
  %s6 = sld [smem:[#allocation0]]
  $region42: #{tpu_custom_call.1} parent=0
    _
  %s8 = ssub.s32 1, %s6
  %s9 = scalar_select 0, %s8, %s6
  $region1: #{tpu_custom_call.1} parent=0
    #allocation2 [shape = 'u8[8192]{0}', space=vmem, size = 0x2000, scoped, tag = 'input window, operand 0, single buffered']
    #allocation3 [shape = 's32[1]{0}', space=sflag, size = 0x4, scoped, tag = 'scoped memory for tpu_custom_call.1']
    #allocation4 [shape = 's32[1]{0}', space=sflag, size = 0x4, scoped, tag = 'scoped memory for tpu_custom_call.1']
    #allocation5 [shape = 'u8[524288]{0}', space=vmem, size = 0x80000, scoped, tag = 'input window, operand 1, single buffered']
    #allocation6 [shape = 's32[1]{0}', space=sflag, size = 0x4, scoped, tag = 'scoped memory for tpu_custom_call.1']
    #allocation7 [shape = 'u8[131072]{0}', space=vmem, size = 0x20000, scoped, tag = 'input window, operand 3, single buffered']
    #allocation8 [shape = 'u8[2048]{0}', space=vmem, size = 0x800, scoped, tag = 'output window, operand 0, single buffered']
    %10 = vsyncpa [#allocation3], 0
    %11 = vsyncpa [#allocation6], 0
    %12 = vsyncpa [#allocation4], 0
    // Predicated region
    $region2: #{tpu_custom_call.1} parent=1 // pred_check
      _
    $region3: #{tpu_custom_call.1} parent=1 // pred_check_branch
      %14 = sbr.rel (0) target = $region5
    $region4: #{tpu_custom_call.1} parent=1 // pred_region
      %s16 = ssub.s32 256, 256
      %17 = vsyncadd [#allocation3], %s16
      %s19 = sshll.u32 [#allocation2], 4
      %s20 = int_to_ptr.vmem [resolvable:$true] %s19
      %22 = dma.hbm_to_vmem [thread:$0]  %s0, 256, %s20, [#allocation3]
    $region5: #{tpu_custom_call.1} parent=1 // pred_fallthru
      _
    // Predicated region
    $region6: #{tpu_custom_call.1} parent=1 // pred_check
      _
    $region7: #{tpu_custom_call.1} parent=1 // pred_check_branch
      %24 = sbr.rel (0) target = $region9
    $region8: #{tpu_custom_call.1} parent=1 // pred_region
      %s26 = ssub.s32 16384, 16384
      %27 = vsyncadd [#allocation6], %s26
      %s28 = sshll.u32 [#allocation5], 4
      %s29 = int_to_ptr.vmem [resolvable:$true] %s28
      %34 = dma.hbm_to_vmem [thread:$0]  %s1, 16384, %s29, [#allocation6], 128, 128, 8
    $region9: #{tpu_custom_call.1} parent=1 // pred_fallthru
      _
    // Predicated region
    $region10: #{tpu_custom_call.1} parent=1 // pred_check
      _
    $region11: #{tpu_custom_call.1} parent=1 // pred_check_branch
      %36 = sbr.rel (0) target = $region13
    $region12: #{tpu_custom_call.1} parent=1 // pred_region
      _
    $region13: #{tpu_custom_call.1} parent=1 // pred_fallthru
      _
    // Predicated region
    $region14: #{tpu_custom_call.1} parent=1 // pred_check
      _
    $region15: #{tpu_custom_call.1} parent=1 // pred_check_branch
      %38 = sbr.rel (0) target = $region17
    $region16: #{tpu_custom_call.1} parent=1 // pred_region
      %s40 = ssub.s32 4096, 4096
      %41 = vsyncadd [#allocation6], %s40
      %s42 = sshll.u32 [#allocation7], 4
      %s43 = int_to_ptr.vmem [resolvable:$true] %s42
      %48 = dma.hbm_to_vmem [thread:$0]  %s3, 4096, %s43, [#allocation6], 128, 128, 8
    $region17: #{tpu_custom_call.1} parent=1 // pred_fallthru
      _
    // Predicated region
    $region18: #{tpu_custom_call.1} parent=1 // pred_check
      _
    $region19: #{tpu_custom_call.1} parent=1 // pred_check_branch
      %50 = sbr.rel (0) target = $region21
    $region20: #{tpu_custom_call.1} parent=1 // pred_region
      _
    $region21: #{tpu_custom_call.1} parent=1 // pred_fallthru
      _
    // Predicated region
    $region22: #{tpu_custom_call.1} parent=1 // pred_check
      _
    $region23: #{tpu_custom_call.1} parent=1 // pred_check_branch
      %52 = sbr.rel (0) target = $region25
    $region24: #{tpu_custom_call.1} parent=1 // pred_region
      %53 = dma.done [#allocation3], 256
    $region25: #{tpu_custom_call.1} parent=1 // pred_fallthru
      _
    // Predicated region
    $region26: #{tpu_custom_call.1} parent=1 // pred_check
      _
    $region27: #{tpu_custom_call.1} parent=1 // pred_check_branch
      %55 = sbr.rel (0) target = $region29
    $region28: #{tpu_custom_call.1} parent=1 // pred_region
      %56 = dma.done [#allocation6], 16384
    $region29: #{tpu_custom_call.1} parent=1 // pred_fallthru
      _
    // Predicated region
    $region30: #{tpu_custom_call.1} parent=1 // pred_check
      _
    $region31: #{tpu_custom_call.1} parent=1 // pred_check_branch
      %58 = sbr.rel (0) target = $region33
    $region32: #{tpu_custom_call.1} parent=1 // pred_region
      %59 = dma.done [#allocation6], 4096
    $region33: #{tpu_custom_call.1} parent=1 // pred_fallthru
      _
    %v60 = vld [vmem:[#allocation2] sm:$0xff]
    %v61 = vld [vmem:[#allocation2 + $0x8] sm:$0xff]
    %v64 = vcombine.high %v60, %v60
    %v66 = vunpack.c.l.s4 1983009808
    %v67 = vunpack.c.0.s8 %v66
    %v68 = vlaneseq
    %v69 = vshrl.u32 %v68, 7
    %v70 = vsub.s32 %v67, %v69
    %v71 = vrot.slane %v60, %v70
    %v73 = vunpack.c.l.s4 1983009808
    %v74 = vunpack.c.0.s8 %v73
    %v75 = vlaneseq
    %v76 = vshrl.u32 %v75, 7
    %v77 = vsub.s32 %v74, %v76
    %v78 = vrot.slane %v64, %v77
    %v79 = vcombine.high %v71, %v71
    %v80 = vcombine.high %v78, %v78
    %v81 = vcombine.high %v61, %v61
    %v83 = vunpack.c.l.s4 1983009808
    %v84 = vunpack.c.0.s8 %v83
    %v85 = vlaneseq
    %v86 = vshrl.u32 %v85, 7
    %v87 = vsub.s32 %v84, %v86
    %v88 = vrot.slane %v61, %v87
    %v90 = vunpack.c.l.s4 1983009808
    %v91 = vunpack.c.0.s8 %v90
    %v92 = vlaneseq
    %v93 = vshrl.u32 %v92, 7
    %v94 = vsub.s32 %v91, %v93
    %v95 = vrot.slane %v81, %v94
    %v96 = vcombine.high %v88, %v88
    %v97 = vcombine.high %v95, %v95
    %v106 = vpack.c.bf16 %v71, %v71
    %v107 = vpack.c.bf16 %v79, %v79
    %v108 = vpack.c.bf16 %v78, %v78
    %v109 = vpack.c.bf16 %v80, %v80
    %v110 = vpack.c.bf16 %v88, %v88
    %v111 = vpack.c.bf16 %v96, %v96
    %v112 = vpack.c.bf16 %v95, %v95
    %v113 = vpack.c.bf16 %v97, %v97
    %v114 = vld [vmem:[#allocation5] sm:$0xff]
    %v115 = vld [vmem:[#allocation5 + $0x8] sm:$0xff]
    %v116 = vld [vmem:[#allocation5 + $0x10] sm:$0xff]
    %v117 = vld [vmem:[#allocation5 + $0x18] sm:$0xff]
    %v118 = vld [vmem:[#allocation5 + $0x20] sm:$0xff]
    %v119 = vld [vmem:[#allocation5 + $0x28] sm:$0xff]
    %v120 = vld [vmem:[#allocation5 + $0x30] sm:$0xff]
    %v121 = vld [vmem:[#allocation5 + $0x38] sm:$0xff]
    %v122 = vld [vmem:[#allocation5 + $0x40] sm:$0xff]
    %v123 = vld [vmem:[#allocation5 + $0x48] sm:$0xff]
    %v124 = vld [vmem:[#allocation5 + $0x50] sm:$0xff]
    %v125 = vld [vmem:[#allocation5 + $0x58] sm:$0xff]
    %v126 = vld [vmem:[#allocation5 + $0x60] sm:$0xff]
    %v127 = vld [vmem:[#allocation5 + $0x68] sm:$0xff]
    %v128 = vld [vmem:[#allocation5 + $0x70] sm:$0xff]
    %v129 = vld [vmem:[#allocation5 + $0x78] sm:$0xff]
    %v130 = vld [vmem:[#allocation5 + $0x80] sm:$0xff]
    %v131 = vld [vmem:[#allocation5 + $0x88] sm:$0xff]
    %v132 = vld [vmem:[#allocation5 + $0x90] sm:$0xff]
    %v133 = vld [vmem:[#allocation5 + $0x98] sm:$0xff]
    %v134 = vld [vmem:[#allocation5 + $0xa0] sm:$0xff]
    %v135 = vld [vmem:[#allocation5 + $0xa8] sm:$0xff]
    %v136 = vld [vmem:[#allocation5 + $0xb0] sm:$0xff]
    %v137 = vld [vmem:[#allocation5 + $0xb8] sm:$0xff]
    %v138 = vld [vmem:[#allocation5 + $0xc0] sm:$0xff]
    %v139 = vld [vmem:[#allocation5 + $0xc8] sm:$0xff]
    %v140 = vld [vmem:[#allocation5 + $0xd0] sm:$0xff]
    %v141 = vld [vmem:[#allocation5 + $0xd8] sm:$0xff]
    %v142 = vld [vmem:[#allocation5 + $0xe0] sm:$0xff]
    %v143 = vld [vmem:[#allocation5 + $0xe8] sm:$0xff]
    %v144 = vld [vmem:[#allocation5 + $0xf0] sm:$0xff]
    %v145 = vld [vmem:[#allocation5 + $0xf8] sm:$0xff]
    %v146 = vld [vmem:[#allocation5 + $0x100] sm:$0xff]
    %v147 = vld [vmem:[#allocation5 + $0x108] sm:$0xff]
    %v148 = vld [vmem:[#allocation5 + $0x110] sm:$0xff]
    %v149 = vld [vmem:[#allocation5 + $0x118] sm:$0xff]
    %v150 = vld [vmem:[#allocation5 + $0x120] sm:$0xff]
    %v151 = vld [vmem:[#allocation5 + $0x128] sm:$0xff]
    %v152 = vld [vmem:[#allocation5 + $0x130] sm:$0xff]
    %v153 = vld [vmem:[#allocation5 + $0x138] sm:$0xff]
    %v154 = vld [vmem:[#allocation5 + $0x140] sm:$0xff]
    %v155 = vld [vmem:[#allocation5 + $0x148] sm:$0xff]
    %v156 = vld [vmem:[#allocation5 + $0x150] sm:$0xff]
    %v157 = vld [vmem:[#allocation5 + $0x158] sm:$0xff]
    %v158 = vld [vmem:[#allocation5 + $0x160] sm:$0xff]
    %v159 = vld [vmem:[#allocation5 + $0x168] sm:$0xff]
    %v160 = vld [vmem:[#allocation5 + $0x170] sm:$0xff]
    %v161 = vld [vmem:[#allocation5 + $0x178] sm:$0xff]
    %v162 = vld [vmem:[#allocation5 + $0x180] sm:$0xff]
    %v163 = vld [vmem:[#allocation5 + $0x188] sm:$0xff]
    %v164 = vld [vmem:[#allocation5 + $0x190] sm:$0xff]
    %v165 = vld [vmem:[#allocation5 + $0x198] sm:$0xff]
    %v166 = vld [vmem:[#allocation5 + $0x1a0] sm:$0xff]
    %v167 = vld [vmem:[#allocation5 + $0x1a8] sm:$0xff]
    %v168 = vld [vmem:[#allocation5 + $0x1b0] sm:$0xff]
    %v169 = vld [vmem:[#allocation5 + $0x1b8] sm:$0xff]
    %v170 = vld [vmem:[#allocation5 + $0x1c0] sm:$0xff]
    %v171 = vld [vmem:[#allocation5 + $0x1c8] sm:$0xff]
    %v172 = vld [vmem:[#allocation5 + $0x1d0] sm:$0xff]
    %v173 = vld [vmem:[#allocation5 + $0x1d8] sm:$0xff]
    %v174 = vld [vmem:[#allocation5 + $0x1e0] sm:$0xff]
    %v175 = vld [vmem:[#allocation5 + $0x1e8] sm:$0xff]
    %v176 = vld [vmem:[#allocation5 + $0x1f0] sm:$0xff]
    %v177 = vld [vmem:[#allocation5 + $0x1f8] sm:$0xff]
    %v178 = vld [vmem:[#allocation5 + $0x200] sm:$0xff]
    %v179 = vld [vmem:[#allocation5 + $0x208] sm:$0xff]
    %v180 = vld [vmem:[#allocation5 + $0x210] sm:$0xff]
    %v181 = vld [vmem:[#allocation5 + $0x218] sm:$0xff]
    %v182 = vld [vmem:[#allocation5 + $0x220] sm:$0xff]
    %v183 = vld [vmem:[#allocation5 + $0x228] sm:$0xff]
    %v184 = vld [vmem:[#allocation5 + $0x230] sm:$0xff]
    %v185 = vld [vmem:[#allocation5 + $0x238] sm:$0xff]
    %v186 = vld [vmem:[#allocation5 + $0x240] sm:$0xff]
    %v187 = vld [vmem:[#allocation5 + $0x248] sm:$0xff]
    %v188 = vld [vmem:[#allocation5 + $0x250] sm:$0xff]
    %v189 = vld [vmem:[#allocation5 + $0x258] sm:$0xff]
    %v190 = vld [vmem:[#allocation5 + $0x260] sm:$0xff]
    %v191 = vld [vmem:[#allocation5 + $0x268] sm:$0xff]
    %v192 = vld [vmem:[#allocation5 + $0x270] sm:$0xff]
    %v193 = vld [vmem:[#allocation5 + $0x278] sm:$0xff]
    %v194 = vld [vmem:[#allocation5 + $0x280] sm:$0xff]
    %v195 = vld [vmem:[#allocation5 + $0x288] sm:$0xff]
    %v196 = vld [vmem:[#allocation5 + $0x290] sm:$0xff]
    %v197 = vld [vmem:[#allocation5 + $0x298] sm:$0xff]
    %v198 = vld [vmem:[#allocation5 + $0x2a0] sm:$0xff]
    %v199 = vld [vmem:[#allocation5 + $0x2a8] sm:$0xff]
    %v200 = vld [vmem:[#allocation5 + $0x2b0] sm:$0xff]
    %v201 = vld [vmem:[#allocation5 + $0x2b8] sm:$0xff]
    %v202 = vld [vmem:[#allocation5 + $0x2c0] sm:$0xff]
    %v203 = vld [vmem:[#allocation5 + $0x2c8] sm:$0xff]
    %v204 = vld [vmem:[#allocation5 + $0x2d0] sm:$0xff]
    %v205 = vld [vmem:[#allocation5 + $0x2d8] sm:$0xff]
    %v206 = vld [vmem:[#allocation5 + $0x2e0] sm:$0xff]
    %v207 = vld [vmem:[#allocation5 + $0x2e8] sm:$0xff]
    %v208 = vld [vmem:[#allocation5 + $0x2f0] sm:$0xff]
    %v209 = vld [vmem:[#allocation5 + $0x2f8] sm:$0xff]
    %v210 = vld [vmem:[#allocation5 + $0x300] sm:$0xff]
    %v211 = vld [vmem:[#allocation5 + $0x308] sm:$0xff]
    %v212 = vld [vmem:[#allocation5 + $0x310] sm:$0xff]
    %v213 = vld [vmem:[#allocation5 + $0x318] sm:$0xff]
    %v214 = vld [vmem:[#allocation5 + $0x320] sm:$0xff]
    %v215 = vld [vmem:[#allocation5 + $0x328] sm:$0xff]
    %v216 = vld [vmem:[#allocation5 + $0x330] sm:$0xff]
    %v217 = vld [vmem:[#allocation5 + $0x338] sm:$0xff]
    %v218 = vld [vmem:[#allocation5 + $0x340] sm:$0xff]
    %v219 = vld [vmem:[#allocation5 + $0x348] sm:$0xff]
    %v220 = vld [vmem:[#allocation5 + $0x350] sm:$0xff]
    %v221 = vld [vmem:[#allocation5 + $0x358] sm:$0xff]
    %v222 = vld [vmem:[#allocation5 + $0x360] sm:$0xff]
    %v223 = vld [vmem:[#allocation5 + $0x368] sm:$0xff]
    %v224 = vld [vmem:[#allocation5 + $0x370] sm:$0xff]
    %v225 = vld [vmem:[#allocation5 + $0x378] sm:$0xff]
    %v226 = vld [vmem:[#allocation5 + $0x380] sm:$0xff]
    %v227 = vld [vmem:[#allocation5 + $0x388] sm:$0xff]
    %v228 = vld [vmem:[#allocation5 + $0x390] sm:$0xff]
    %v229 = vld [vmem:[#allocation5 + $0x398] sm:$0xff]
    %v230 = vld [vmem:[#allocation5 + $0x3a0] sm:$0xff]
    %v231 = vld [vmem:[#allocation5 + $0x3a8] sm:$0xff]
    %v232 = vld [vmem:[#allocation5 + $0x3b0] sm:$0xff]
    %v233 = vld [vmem:[#allocation5 + $0x3b8] sm:$0xff]
    %v234 = vld [vmem:[#allocation5 + $0x3c0] sm:$0xff]
    %v235 = vld [vmem:[#allocation5 + $0x3c8] sm:$0xff]
    %v236 = vld [vmem:[#allocation5 + $0x3d0] sm:$0xff]
    %v237 = vld [vmem:[#allocation5 + $0x3d8] sm:$0xff]
    %v238 = vld [vmem:[#allocation5 + $0x3e0] sm:$0xff]
    %v239 = vld [vmem:[#allocation5 + $0x3e8] sm:$0xff]
    %v240 = vld [vmem:[#allocation5 + $0x3f0] sm:$0xff]
    %v241 = vld [vmem:[#allocation5 + $0x3f8] sm:$0xff]
    %v242 = vld [vmem:[%s2] sm:$0x3]
    %v244 = vlaneseq
    %v245 = vshrl.u32 %v244, 7
    %v246 = vsub.s32 0, %v245
    %v247 = vrot.slane %v242, %v246
    %v248 = vlaneseq
    %v249 = vshrl.u32 %v248, 7
    %v250 = vsub.s32 1, %v249
    %v251 = vrot.slane %v242, %v250
    %v382 = vunpack.c.l.b16 %v114
    %v383 = vunpack.c.h.b16 %v114
    %v384 = vunpack.c.l.b16 %v115
    %v385 = vunpack.c.h.b16 %v115
    %v386 = vunpack.c.l.b16 %v116
    %v387 = vunpack.c.h.b16 %v116
    %v388 = vunpack.c.l.b16 %v117
    %v389 = vunpack.c.h.b16 %v117
    %v390 = vunpack.c.l.b16 %v118
    %v391 = vunpack.c.h.b16 %v118
    %v392 = vunpack.c.l.b16 %v119
    %v393 = vunpack.c.h.b16 %v119
    %v394 = vunpack.c.l.b16 %v120
    %v395 = vunpack.c.h.b16 %v120
    %v396 = vunpack.c.l.b16 %v121
    %v397 = vunpack.c.h.b16 %v121
    %v398 = vunpack.c.l.b16 %v122
    %v399 = vunpack.c.h.b16 %v122
    %v400 = vunpack.c.l.b16 %v123
    %v401 = vunpack.c.h.b16 %v123
    %v402 = vunpack.c.l.b16 %v124
    %v403 = vunpack.c.h.b16 %v124
    %v404 = vunpack.c.l.b16 %v125
    %v405 = vunpack.c.h.b16 %v125
    %v406 = vunpack.c.l.b16 %v126
    %v407 = vunpack.c.h.b16 %v126
    %v408 = vunpack.c.l.b16 %v127
    %v409 = vunpack.c.h.b16 %v127
    %v410 = vunpack.c.l.b16 %v128
    %v411 = vunpack.c.h.b16 %v128
    %v412 = vunpack.c.l.b16 %v129
    %v413 = vunpack.c.h.b16 %v129
    %v414 = vunpack.c.l.b16 %v130
    %v415 = vunpack.c.h.b16 %v130
    %v416 = vunpack.c.l.b16 %v131
    %v417 = vunpack.c.h.b16 %v131
    %v418 = vunpack.c.l.b16 %v132
    %v419 = vunpack.c.h.b16 %v132
    %v420 = vunpack.c.l.b16 %v133
    %v421 = vunpack.c.h.b16 %v133
    %v422 = vunpack.c.l.b16 %v134
    %v423 = vunpack.c.h.b16 %v134
    %v424 = vunpack.c.l.b16 %v135
    %v425 = vunpack.c.h.b16 %v135
    %v426 = vunpack.c.l.b16 %v136
    %v427 = vunpack.c.h.b16 %v136
    %v428 = vunpack.c.l.b16 %v137
    %v429 = vunpack.c.h.b16 %v137
    %v430 = vunpack.c.l.b16 %v138
    %v431 = vunpack.c.h.b16 %v138
    %v432 = vunpack.c.l.b16 %v139
    %v433 = vunpack.c.h.b16 %v139
    %v434 = vunpack.c.l.b16 %v140
    %v435 = vunpack.c.h.b16 %v140
    %v436 = vunpack.c.l.b16 %v141
    %v437 = vunpack.c.h.b16 %v141
    %v438 = vunpack.c.l.b16 %v142
    %v439 = vunpack.c.h.b16 %v142
    %v440 = vunpack.c.l.b16 %v143
    %v441 = vunpack.c.h.b16 %v143
    %v442 = vunpack.c.l.b16 %v144
    %v443 = vunpack.c.h.b16 %v144
    %v444 = vunpack.c.l.b16 %v145
    %v445 = vunpack.c.h.b16 %v145
    %v446 = vunpack.c.l.b16 %v146
    %v447 = vunpack.c.h.b16 %v146
    %v448 = vunpack.c.l.b16 %v147
    %v449 = vunpack.c.h.b16 %v147
    %v450 = vunpack.c.l.b16 %v148
    %v451 = vunpack.c.h.b16 %v148
    %v452 = vunpack.c.l.b16 %v149
    %v453 = vunpack.c.h.b16 %v149
    %v454 = vunpack.c.l.b16 %v150
    %v455 = vunpack.c.h.b16 %v150
    %v456 = vunpack.c.l.b16 %v151
    %v457 = vunpack.c.h.b16 %v151
    %v458 = vunpack.c.l.b16 %v152
    %v459 = vunpack.c.h.b16 %v152
    %v460 = vunpack.c.l.b16 %v153
    %v461 = vunpack.c.h.b16 %v153
    %v462 = vunpack.c.l.b16 %v154
    %v463 = vunpack.c.h.b16 %v154
    %v464 = vunpack.c.l.b16 %v155
    %v465 = vunpack.c.h.b16 %v155
    %v466 = vunpack.c.l.b16 %v156
    %v467 = vunpack.c.h.b16 %v156
    %v468 = vunpack.c.l.b16 %v157
    %v469 = vunpack.c.h.b16 %v157
    %v470 = vunpack.c.l.b16 %v158
    %v471 = vunpack.c.h.b16 %v158
    %v472 = vunpack.c.l.b16 %v159
    %v473 = vunpack.c.h.b16 %v159
    %v474 = vunpack.c.l.b16 %v160
    %v475 = vunpack.c.h.b16 %v160
    %v476 = vunpack.c.l.b16 %v161
    %v477 = vunpack.c.h.b16 %v161
    %v478 = vunpack.c.l.b16 %v162
    %v479 = vunpack.c.h.b16 %v162
    %v480 = vunpack.c.l.b16 %v163
    %v481 = vunpack.c.h.b16 %v163
    %v482 = vunpack.c.l.b16 %v164
    %v483 = vunpack.c.h.b16 %v164
    %v484 = vunpack.c.l.b16 %v165
    %v485 = vunpack.c.h.b16 %v165
    %v486 = vunpack.c.l.b16 %v166
    %v487 = vunpack.c.h.b16 %v166
    %v488 = vunpack.c.l.b16 %v167
    %v489 = vunpack.c.h.b16 %v167
    %v490 = vunpack.c.l.b16 %v168
    %v491 = vunpack.c.h.b16 %v168
    %v492 = vunpack.c.l.b16 %v169
    %v493 = vunpack.c.h.b16 %v169
    %v494 = vunpack.c.l.b16 %v170
    %v495 = vunpack.c.h.b16 %v170
    %v496 = vunpack.c.l.b16 %v171
    %v497 = vunpack.c.h.b16 %v171
    %v498 = vunpack.c.l.b16 %v172
    %v499 = vunpack.c.h.b16 %v172
    %v500 = vunpack.c.l.b16 %v173
    %v501 = vunpack.c.h.b16 %v173
    %v502 = vunpack.c.l.b16 %v174
    %v503 = vunpack.c.h.b16 %v174
    %v504 = vunpack.c.l.b16 %v175
    %v505 = vunpack.c.h.b16 %v175
    %v506 = vunpack.c.l.b16 %v176
    %v507 = vunpack.c.h.b16 %v176
    %v508 = vunpack.c.l.b16 %v177
    %v509 = vunpack.c.h.b16 %v177
    %v510 = vunpack.c.l.b16 %v178
    %v511 = vunpack.c.h.b16 %v178
    %v512 = vunpack.c.l.b16 %v179
    %v513 = vunpack.c.h.b16 %v179
    %v514 = vunpack.c.l.b16 %v180
    %v515 = vunpack.c.h.b16 %v180
    %v516 = vunpack.c.l.b16 %v181
    %v517 = vunpack.c.h.b16 %v181
    %v518 = vunpack.c.l.b16 %v182
    %v519 = vunpack.c.h.b16 %v182
    %v520 = vunpack.c.l.b16 %v183
    %v521 = vunpack.c.h.b16 %v183
    %v522 = vunpack.c.l.b16 %v184
    %v523 = vunpack.c.h.b16 %v184
    %v524 = vunpack.c.l.b16 %v185
    %v525 = vunpack.c.h.b16 %v185
    %v526 = vunpack.c.l.b16 %v186
    %v527 = vunpack.c.h.b16 %v186
    %v528 = vunpack.c.l.b16 %v187
    %v529 = vunpack.c.h.b16 %v187
    %v530 = vunpack.c.l.b16 %v188
    %v531 = vunpack.c.h.b16 %v188
    %v532 = vunpack.c.l.b16 %v189
    %v533 = vunpack.c.h.b16 %v189
    %v534 = vunpack.c.l.b16 %v190
    %v535 = vunpack.c.h.b16 %v190
    %v536 = vunpack.c.l.b16 %v191
    %v537 = vunpack.c.h.b16 %v191
    %v538 = vunpack.c.l.b16 %v192
    %v539 = vunpack.c.h.b16 %v192
    %v540 = vunpack.c.l.b16 %v193
    %v541 = vunpack.c.h.b16 %v193
    %v542 = vunpack.c.l.b16 %v194
    %v543 = vunpack.c.h.b16 %v194
    %v544 = vunpack.c.l.b16 %v195
    %v545 = vunpack.c.h.b16 %v195
    %v546 = vunpack.c.l.b16 %v196
    %v547 = vunpack.c.h.b16 %v196
    %v548 = vunpack.c.l.b16 %v197
    %v549 = vunpack.c.h.b16 %v197
    %v550 = vunpack.c.l.b16 %v198
    %v551 = vunpack.c.h.b16 %v198
    %v552 = vunpack.c.l.b16 %v199
    %v553 = vunpack.c.h.b16 %v199
    %v554 = vunpack.c.l.b16 %v200
    %v555 = vunpack.c.h.b16 %v200
    %v556 = vunpack.c.l.b16 %v201
    %v557 = vunpack.c.h.b16 %v201
    %v558 = vunpack.c.l.b16 %v202
    %v559 = vunpack.c.h.b16 %v202
    %v560 = vunpack.c.l.b16 %v203
    %v561 = vunpack.c.h.b16 %v203
    %v562 = vunpack.c.l.b16 %v204
    %v563 = vunpack.c.h.b16 %v204
    %v564 = vunpack.c.l.b16 %v205
    %v565 = vunpack.c.h.b16 %v205
    %v566 = vunpack.c.l.b16 %v206
    %v567 = vunpack.c.h.b16 %v206
    %v568 = vunpack.c.l.b16 %v207
    %v569 = vunpack.c.h.b16 %v207
    %v570 = vunpack.c.l.b16 %v208
    %v571 = vunpack.c.h.b16 %v208
    %v572 = vunpack.c.l.b16 %v209
    %v573 = vunpack.c.h.b16 %v209
    %v574 = vunpack.c.l.b16 %v210
    %v575 = vunpack.c.h.b16 %v210
    %v576 = vunpack.c.l.b16 %v211
    %v577 = vunpack.c.h.b16 %v211
    %v578 = vunpack.c.l.b16 %v212
    %v579 = vunpack.c.h.b16 %v212
    %v580 = vunpack.c.l.b16 %v213
    %v581 = vunpack.c.h.b16 %v213
    %v582 = vunpack.c.l.b16 %v214
    %v583 = vunpack.c.h.b16 %v214
    %v584 = vunpack.c.l.b16 %v215
    %v585 = vunpack.c.h.b16 %v215
    %v586 = vunpack.c.l.b16 %v216
    %v587 = vunpack.c.h.b16 %v216
    %v588 = vunpack.c.l.b16 %v217
    %v589 = vunpack.c.h.b16 %v217
    %v590 = vunpack.c.l.b16 %v218
    %v591 = vunpack.c.h.b16 %v218
    %v592 = vunpack.c.l.b16 %v219
    %v593 = vunpack.c.h.b16 %v219
    %v594 = vunpack.c.l.b16 %v220
    %v595 = vunpack.c.h.b16 %v220
    %v596 = vunpack.c.l.b16 %v221
    %v597 = vunpack.c.h.b16 %v221
    %v598 = vunpack.c.l.b16 %v222
    %v599 = vunpack.c.h.b16 %v222
    %v600 = vunpack.c.l.b16 %v223
    %v601 = vunpack.c.h.b16 %v223
    %v602 = vunpack.c.l.b16 %v224
    %v603 = vunpack.c.h.b16 %v224
    %v604 = vunpack.c.l.b16 %v225
    %v605 = vunpack.c.h.b16 %v225
    %v606 = vunpack.c.l.b16 %v226
    %v607 = vunpack.c.h.b16 %v226
    %v608 = vunpack.c.l.b16 %v227
    %v609 = vunpack.c.h.b16 %v227
    %v610 = vunpack.c.l.b16 %v228
    %v611 = vunpack.c.h.b16 %v228
    %v612 = vunpack.c.l.b16 %v229
    %v613 = vunpack.c.h.b16 %v229
    %v614 = vunpack.c.l.b16 %v230
    %v615 = vunpack.c.h.b16 %v230
    %v616 = vunpack.c.l.b16 %v231
    %v617 = vunpack.c.h.b16 %v231
    %v618 = vunpack.c.l.b16 %v232
    %v619 = vunpack.c.h.b16 %v232
    %v620 = vunpack.c.l.b16 %v233
    %v621 = vunpack.c.h.b16 %v233
    %v622 = vunpack.c.l.b16 %v234
    %v623 = vunpack.c.h.b16 %v234
    %v624 = vunpack.c.l.b16 %v235
    %v625 = vunpack.c.h.b16 %v235
    %v626 = vunpack.c.l.b16 %v236
    %v627 = vunpack.c.h.b16 %v236
    %v628 = vunpack.c.l.b16 %v237
    %v629 = vunpack.c.h.b16 %v237
    %v630 = vunpack.c.l.b16 %v238
    %v631 = vunpack.c.h.b16 %v238
    %v632 = vunpack.c.l.b16 %v239
    %v633 = vunpack.c.h.b16 %v239
    %v634 = vunpack.c.l.b16 %v240
    %v635 = vunpack.c.h.b16 %v240
    %v636 = vunpack.c.l.b16 %v241
    %v637 = vunpack.c.h.b16 %v241
    %v638 = vpack.c.b16 %v384, %v382
    %v639 = vpack.c.b16 %v385, %v383
    %v640 = vpack.c.b16 %v388, %v386
    %v641 = vpack.c.b16 %v389, %v387
    %v642 = vpack.c.b16 %v392, %v390
    %v643 = vpack.c.b16 %v393, %v391
    %v644 = vpack.c.b16 %v396, %v394
    %v645 = vpack.c.b16 %v397, %v395
    %v646 = vpack.c.b16 %v400, %v398
    %v647 = vpack.c.b16 %v401, %v399
    %v648 = vpack.c.b16 %v404, %v402
    %v649 = vpack.c.b16 %v405, %v403
    %v650 = vpack.c.b16 %v408, %v406
    %v651 = vpack.c.b16 %v409, %v407
    %v652 = vpack.c.b16 %v412, %v410
    %v653 = vpack.c.b16 %v413, %v411
    %v654 = vpack.c.b16 %v416, %v414
    %v655 = vpack.c.b16 %v417, %v415
    %v656 = vpack.c.b16 %v420, %v418
    %v657 = vpack.c.b16 %v421, %v419
    %v658 = vpack.c.b16 %v424, %v422
    %v659 = vpack.c.b16 %v425, %v423
    %v660 = vpack.c.b16 %v428, %v426
    %v661 = vpack.c.b16 %v429, %v427
    %v662 = vpack.c.b16 %v432, %v430
    %v663 = vpack.c.b16 %v433, %v431
    %v664 = vpack.c.b16 %v436, %v434
    %v665 = vpack.c.b16 %v437, %v435
    %v666 = vpack.c.b16 %v440, %v438
    %v667 = vpack.c.b16 %v441, %v439
    %v668 = vpack.c.b16 %v444, %v442
    %v669 = vpack.c.b16 %v445, %v443
    %v670 = vpack.c.b16 %v448, %v446
    %v671 = vpack.c.b16 %v449, %v447
    %v672 = vpack.c.b16 %v452, %v450
    %v673 = vpack.c.b16 %v453, %v451
    %v674 = vpack.c.b16 %v456, %v454
    %v675 = vpack.c.b16 %v457, %v455
    %v676 = vpack.c.b16 %v460, %v458
    %v677 = vpack.c.b16 %v461, %v459
    %v678 = vpack.c.b16 %v464, %v462
    %v679 = vpack.c.b16 %v465, %v463
    %v680 = vpack.c.b16 %v468, %v466
    %v681 = vpack.c.b16 %v469, %v467
    %v682 = vpack.c.b16 %v472, %v470
    %v683 = vpack.c.b16 %v473, %v471
    %v684 = vpack.c.b16 %v476, %v474
    %v685 = vpack.c.b16 %v477, %v475
    %v686 = vpack.c.b16 %v480, %v478
    %v687 = vpack.c.b16 %v481, %v479
    %v688 = vpack.c.b16 %v484, %v482
    %v689 = vpack.c.b16 %v485, %v483
    %v690 = vpack.c.b16 %v488, %v486
    %v691 = vpack.c.b16 %v489, %v487
    %v692 = vpack.c.b16 %v492, %v490
    %v693 = vpack.c.b16 %v493, %v491
    %v694 = vpack.c.b16 %v496, %v494
    %v695 = vpack.c.b16 %v497, %v495
    %v696 = vpack.c.b16 %v500, %v498
    %v697 = vpack.c.b16 %v501, %v499
    %v698 = vpack.c.b16 %v504, %v502
    %v699 = vpack.c.b16 %v505, %v503
    %v700 = vpack.c.b16 %v508, %v506
    %v701 = vpack.c.b16 %v509, %v507
    %v702 = vpack.c.b16 %v512, %v510
    %v703 = vpack.c.b16 %v513, %v511
    %v704 = vpack.c.b16 %v516, %v514
    %v705 = vpack.c.b16 %v517, %v515
    %v706 = vpack.c.b16 %v520, %v518
    %v707 = vpack.c.b16 %v521, %v519
    %v708 = vpack.c.b16 %v524, %v522
    %v709 = vpack.c.b16 %v525, %v523
    %v710 = vpack.c.b16 %v528, %v526
    %v711 = vpack.c.b16 %v529, %v527
    %v712 = vpack.c.b16 %v532, %v530
    %v713 = vpack.c.b16 %v533, %v531
    %v714 = vpack.c.b16 %v536, %v534
    %v715 = vpack.c.b16 %v537, %v535
    %v716 = vpack.c.b16 %v540, %v538
    %v717 = vpack.c.b16 %v541, %v539
    %v718 = vpack.c.b16 %v544, %v542
    %v719 = vpack.c.b16 %v545, %v543
    %v720 = vpack.c.b16 %v548, %v546
    %v721 = vpack.c.b16 %v549, %v547
    %v722 = vpack.c.b16 %v552, %v550
    %v723 = vpack.c.b16 %v553, %v551
    %v724 = vpack.c.b16 %v556, %v554
    %v725 = vpack.c.b16 %v557, %v555
    %v726 = vpack.c.b16 %v560, %v558
    %v727 = vpack.c.b16 %v561, %v559
    %v728 = vpack.c.b16 %v564, %v562
    %v729 = vpack.c.b16 %v565, %v563
    %v730 = vpack.c.b16 %v568, %v566
    %v731 = vpack.c.b16 %v569, %v567
    %v732 = vpack.c.b16 %v572, %v570
    %v733 = vpack.c.b16 %v573, %v571
    %v734 = vpack.c.b16 %v576, %v574
    %v735 = vpack.c.b16 %v577, %v575
    %v736 = vpack.c.b16 %v580, %v578
    %v737 = vpack.c.b16 %v581, %v579
    %v738 = vpack.c.b16 %v584, %v582
    %v739 = vpack.c.b16 %v585, %v583
    %v740 = vpack.c.b16 %v588, %v586
    %v741 = vpack.c.b16 %v589, %v587
    %v742 = vpack.c.b16 %v592, %v590
    %v743 = vpack.c.b16 %v593, %v591
    %v744 = vpack.c.b16 %v596, %v594
    %v745 = vpack.c.b16 %v597, %v595
    %v746 = vpack.c.b16 %v600, %v598
    %v747 = vpack.c.b16 %v601, %v599
    %v748 = vpack.c.b16 %v604, %v602
    %v749 = vpack.c.b16 %v605, %v603
    %v750 = vpack.c.b16 %v608, %v606
    %v751 = vpack.c.b16 %v609, %v607
    %v752 = vpack.c.b16 %v612, %v610
    %v753 = vpack.c.b16 %v613, %v611
    %v754 = vpack.c.b16 %v616, %v614
    %v755 = vpack.c.b16 %v617, %v615
    %v756 = vpack.c.b16 %v620, %v618
    %v757 = vpack.c.b16 %v621, %v619
    %v758 = vpack.c.b16 %v624, %v622
    %v759 = vpack.c.b16 %v625, %v623
    %v760 = vpack.c.b16 %v628, %v626
    %v761 = vpack.c.b16 %v629, %v627
    %v762 = vpack.c.b16 %v632, %v630
    %v763 = vpack.c.b16 %v633, %v631
    %v764 = vpack.c.b16 %v636, %v634
    %v765 = vpack.c.b16 %v637, %v635
    %894 = vmatprep.subr.bf16.mxu0 %v639
    %895 = vmatpush1.bf16.msra.mxu0 %v638
    %896 = vmatprep.subr.bf16.mxu0 %v641
    %897 = vmatpush1.bf16.msra.mxu0 %v640
    %898 = vmatprep.subr.bf16.mxu0 %v643
    %899 = vmatpush1.bf16.msra.mxu0 %v642
    %900 = vmatprep.subr.bf16.mxu0 %v645
    %901 = vmatpush1.bf16.msra.mxu0 %v644
    %902 = vmatprep.subr.bf16.mxu0 %v647
    %903 = vmatpush1.bf16.msra.mxu0 %v646
    %904 = vmatprep.subr.bf16.mxu0 %v649
    %905 = vmatpush1.bf16.msra.mxu0 %v648
    %906 = vmatprep.subr.bf16.mxu0 %v651
    %907 = vmatpush1.bf16.msra.mxu0 %v650
    %908 = vmatprep.subr.bf16.mxu0 %v653
    %909 = vmatpush1.bf16.msra.mxu0 %v652
    %910 = vmatprep.subr.bf16.mxu0 %v655
    %911 = vmatpush1.bf16.msra.mxu0 %v654
    %912 = vmatprep.subr.bf16.mxu0 %v657
    %913 = vmatpush1.bf16.msra.mxu0 %v656
    %914 = vmatprep.subr.bf16.mxu0 %v659
    %915 = vmatpush1.bf16.msra.mxu0 %v658
    %916 = vmatprep.subr.bf16.mxu0 %v661
    %917 = vmatpush1.bf16.msra.mxu0 %v660
    %918 = vmatprep.subr.bf16.mxu0 %v663
    %919 = vmatpush1.bf16.msra.mxu0 %v662
    %920 = vmatprep.subr.bf16.mxu0 %v665
    %921 = vmatpush1.bf16.msra.mxu0 %v664
    %922 = vmatprep.subr.bf16.mxu0 %v667
    %923 = vmatpush1.bf16.msra.mxu0 %v666
    %924 = vmatprep.subr.bf16.mxu0 %v669
    %925 = vmatpush1.bf16.msra.mxu0 %v668
    %926 = vmatprep.mubr.bf16.mxu0 %v107
    %927 = vmatmul.mubr.bf16.gmra.mrb[0].mxu0 %v106
    %v928 = vpop.f32.mrb[0].mxu0
    %v929 = vadd.f32 %v247, %v928
    %v930 = vpop.f32.mrb[0].mxu0
    %v931 = vadd.f32 %v251, %v930
    %v932 = vpop.f32.mrb[0].mxu0
    %v933 = vpop.f32.mrb[0].mxu0
    %934 = vdwg.mxu0
    %935 = vmatprep.subr.bf16.mxu0 %v671
    %936 = vmatpush1.bf16.msra.mxu0 %v670
    %937 = vmatprep.subr.bf16.mxu0 %v673
    %938 = vmatpush1.bf16.msra.mxu0 %v672
    %939 = vmatprep.subr.bf16.mxu0 %v675
    %940 = vmatpush1.bf16.msra.mxu0 %v674
    %941 = vmatprep.subr.bf16.mxu0 %v677
    %942 = vmatpush1.bf16.msra.mxu0 %v676
    %943 = vmatprep.subr.bf16.mxu0 %v679
    %944 = vmatpush1.bf16.msra.mxu0 %v678
    %945 = vmatprep.subr.bf16.mxu0 %v681
    %946 = vmatpush1.bf16.msra.mxu0 %v680
    %947 = vmatprep.subr.bf16.mxu0 %v683
    %948 = vmatpush1.bf16.msra.mxu0 %v682
    %949 = vmatprep.subr.bf16.mxu0 %v685
    %950 = vmatpush1.bf16.msra.mxu0 %v684
    %951 = vmatprep.subr.bf16.mxu0 %v687
    %952 = vmatpush1.bf16.msra.mxu0 %v686
    %953 = vmatprep.subr.bf16.mxu0 %v689
    %954 = vmatpush1.bf16.msra.mxu0 %v688
    %955 = vmatprep.subr.bf16.mxu0 %v691
    %956 = vmatpush1.bf16.msra.mxu0 %v690
    %957 = vmatprep.subr.bf16.mxu0 %v693
    %958 = vmatpush1.bf16.msra.mxu0 %v692
    %959 = vmatprep.subr.bf16.mxu0 %v695
    %960 = vmatpush1.bf16.msra.mxu0 %v694
    %961 = vmatprep.subr.bf16.mxu0 %v697
    %962 = vmatpush1.bf16.msra.mxu0 %v696
    %963 = vmatprep.subr.bf16.mxu0 %v699
    %964 = vmatpush1.bf16.msra.mxu0 %v698
    %965 = vmatprep.subr.bf16.mxu0 %v701
    %966 = vmatpush1.bf16.msra.mxu0 %v700
    %967 = vmatprep.mubr.bf16.mxu0 %v109
    %968 = vmatmul.mubr.bf16.gmra.mrb[0].mxu0 %v108
    %v969 = vpop.f32.mrb[0].mxu0
    %v970 = vadd.f32 %v929, %v969
    %v971 = vpop.f32.mrb[0].mxu0
    %v972 = vadd.f32 %v931, %v971
    %v973 = vpop.f32.mrb[0].mxu0
    %v974 = vpop.f32.mrb[0].mxu0
    %975 = vdwg.mxu0
    %976 = vmatprep.subr.bf16.mxu0 %v703
    %977 = vmatpush1.bf16.msra.mxu0 %v702
    %978 = vmatprep.subr.bf16.mxu0 %v705
    %979 = vmatpush1.bf16.msra.mxu0 %v704
    %980 = vmatprep.subr.bf16.mxu0 %v707
    %981 = vmatpush1.bf16.msra.mxu0 %v706
    %982 = vmatprep.subr.bf16.mxu0 %v709
    %983 = vmatpush1.bf16.msra.mxu0 %v708
    %984 = vmatprep.subr.bf16.mxu0 %v711
    %985 = vmatpush1.bf16.msra.mxu0 %v710
    %986 = vmatprep.subr.bf16.mxu0 %v713
    %987 = vmatpush1.bf16.msra.mxu0 %v712
    %988 = vmatprep.subr.bf16.mxu0 %v715
    %989 = vmatpush1.bf16.msra.mxu0 %v714
    %990 = vmatprep.subr.bf16.mxu0 %v717
    %991 = vmatpush1.bf16.msra.mxu0 %v716
    %992 = vmatprep.subr.bf16.mxu0 %v719
    %993 = vmatpush1.bf16.msra.mxu0 %v718
    %994 = vmatprep.subr.bf16.mxu0 %v721
    %995 = vmatpush1.bf16.msra.mxu0 %v720
    %996 = vmatprep.subr.bf16.mxu0 %v723
    %997 = vmatpush1.bf16.msra.mxu0 %v722
    %998 = vmatprep.subr.bf16.mxu0 %v725
    %999 = vmatpush1.bf16.msra.mxu0 %v724
    %1000 = vmatprep.subr.bf16.mxu0 %v727
    %1001 = vmatpush1.bf16.msra.mxu0 %v726
    %1002 = vmatprep.subr.bf16.mxu0 %v729
    %1003 = vmatpush1.bf16.msra.mxu0 %v728
    %1004 = vmatprep.subr.bf16.mxu0 %v731
    %1005 = vmatpush1.bf16.msra.mxu0 %v730
    %1006 = vmatprep.subr.bf16.mxu0 %v733
    %1007 = vmatpush1.bf16.msra.mxu0 %v732
    %1008 = vmatprep.mubr.bf16.mxu0 %v111
    %1009 = vmatmul.mubr.bf16.gmra.mrb[0].mxu0 %v110
    %v1010 = vpop.f32.mrb[0].mxu0
    %v1011 = vadd.f32 %v970, %v1010
    %v1012 = vpop.f32.mrb[0].mxu0
    %v1013 = vadd.f32 %v972, %v1012
    %v1014 = vpop.f32.mrb[0].mxu0
    %v1015 = vpop.f32.mrb[0].mxu0
    %1016 = vdwg.mxu0
    %1017 = vmatprep.subr.bf16.mxu0 %v735
    %1018 = vmatpush1.bf16.msra.mxu0 %v734
    %1019 = vmatprep.subr.bf16.mxu0 %v737
    %1020 = vmatpush1.bf16.msra.mxu0 %v736
    %1021 = vmatprep.subr.bf16.mxu0 %v739
    %1022 = vmatpush1.bf16.msra.mxu0 %v738
    %1023 = vmatprep.subr.bf16.mxu0 %v741
    %1024 = vmatpush1.bf16.msra.mxu0 %v740
    %1025 = vmatprep.subr.bf16.mxu0 %v743
    %1026 = vmatpush1.bf16.msra.mxu0 %v742
    %1027 = vmatprep.subr.bf16.mxu0 %v745
    %1028 = vmatpush1.bf16.msra.mxu0 %v744
    %1029 = vmatprep.subr.bf16.mxu0 %v747
    %1030 = vmatpush1.bf16.msra.mxu0 %v746
    %1031 = vmatprep.subr.bf16.mxu0 %v749
    %1032 = vmatpush1.bf16.msra.mxu0 %v748
    %1033 = vmatprep.subr.bf16.mxu0 %v751
    %1034 = vmatpush1.bf16.msra.mxu0 %v750
    %1035 = vmatprep.subr.bf16.mxu0 %v753
    %1036 = vmatpush1.bf16.msra.mxu0 %v752
    %1037 = vmatprep.subr.bf16.mxu0 %v755
    %1038 = vmatpush1.bf16.msra.mxu0 %v754
    %1039 = vmatprep.subr.bf16.mxu0 %v757
    %1040 = vmatpush1.bf16.msra.mxu0 %v756
    %1041 = vmatprep.subr.bf16.mxu0 %v759
    %1042 = vmatpush1.bf16.msra.mxu0 %v758
    %1043 = vmatprep.subr.bf16.mxu0 %v761
    %1044 = vmatpush1.bf16.msra.mxu0 %v760
    %1045 = vmatprep.subr.bf16.mxu0 %v763
    %1046 = vmatpush1.bf16.msra.mxu0 %v762
    %1047 = vmatprep.subr.bf16.mxu0 %v765
    %1048 = vmatpush1.bf16.msra.mxu0 %v764
    %1049 = vmatprep.mubr.bf16.mxu0 %v113
    %1050 = vmatmul.mubr.bf16.gmra.mrb[0].mxu0 %v112
    %v1051 = vpop.f32.mrb[0].mxu0
    %v1052 = vadd.f32 %v1011, %v1051
    %v1053 = vpop.f32.mrb[0].mxu0
    %v1054 = vadd.f32 %v1013, %v1053
    %v1055 = vpop.f32.mrb[0].mxu0
    %v1056 = vpop.f32.mrb[0].mxu0
    %1057 = vdwg.mxu0
    %v1058 = vmax.f32 %v1052, 0.0
    %v1059 = vmax.f32 %v1054, 0.0
    %v1060 = vpack.c.bf16 %v1058, %v1058
    %v1061 = vpack.c.bf16 %v1059, %v1059
    %v1062 = vld [vmem:[#allocation7] sm:$0xff]
    %v1063 = vld [vmem:[#allocation7 + $0x8] sm:$0xff]
    %v1064 = vld [vmem:[#allocation7 + $0x10] sm:$0xff]
    %v1065 = vld [vmem:[#allocation7 + $0x18] sm:$0xff]
    %v1066 = vld [vmem:[#allocation7 + $0x20] sm:$0xff]
    %v1067 = vld [vmem:[#allocation7 + $0x28] sm:$0xff]
    %v1068 = vld [vmem:[#allocation7 + $0x30] sm:$0xff]
    %v1069 = vld [vmem:[#allocation7 + $0x38] sm:$0xff]
    %v1070 = vld [vmem:[#allocation7 + $0x40] sm:$0xff]
    %v1071 = vld [vmem:[#allocation7 + $0x48] sm:$0xff]
    %v1072 = vld [vmem:[#allocation7 + $0x50] sm:$0xff]
    %v1073 = vld [vmem:[#allocation7 + $0x58] sm:$0xff]
    %v1074 = vld [vmem:[#allocation7 + $0x60] sm:$0xff]
    %v1075 = vld [vmem:[#allocation7 + $0x68] sm:$0xff]
    %v1076 = vld [vmem:[#allocation7 + $0x70] sm:$0xff]
    %v1077 = vld [vmem:[#allocation7 + $0x78] sm:$0xff]
    %v1078 = vld [vmem:[#allocation7 + $0x80] sm:$0xff]
    %v1079 = vld [vmem:[#allocation7 + $0x88] sm:$0xff]
    %v1080 = vld [vmem:[#allocation7 + $0x90] sm:$0xff]
    %v1081 = vld [vmem:[#allocation7 + $0x98] sm:$0xff]
    %v1082 = vld [vmem:[#allocation7 + $0xa0] sm:$0xff]
    %v1083 = vld [vmem:[#allocation7 + $0xa8] sm:$0xff]
    %v1084 = vld [vmem:[#allocation7 + $0xb0] sm:$0xff]
    %v1085 = vld [vmem:[#allocation7 + $0xb8] sm:$0xff]
    %v1086 = vld [vmem:[#allocation7 + $0xc0] sm:$0xff]
    %v1087 = vld [vmem:[#allocation7 + $0xc8] sm:$0xff]
    %v1088 = vld [vmem:[#allocation7 + $0xd0] sm:$0xff]
    %v1089 = vld [vmem:[#allocation7 + $0xd8] sm:$0xff]
    %v1090 = vld [vmem:[#allocation7 + $0xe0] sm:$0xff]
    %v1091 = vld [vmem:[#allocation7 + $0xe8] sm:$0xff]
    %v1092 = vld [vmem:[#allocation7 + $0xf0] sm:$0xff]
    %v1093 = vld [vmem:[#allocation7 + $0xf8] sm:$0xff]
    %v1094 = vld [vmem:[%s4] sm:$0x3]
    %v1096 = vlaneseq
    %v1097 = vshrl.u32 %v1096, 7
    %v1098 = vsub.s32 0, %v1097
    %v1099 = vrot.slane %v1094, %v1098
    %v1100 = vlaneseq
    %v1101 = vshrl.u32 %v1100, 7
    %v1102 = vsub.s32 1, %v1101
    %v1103 = vrot.slane %v1094, %v1102
    %v1138 = vunpack.c.l.b16 %v1062
    %v1139 = vunpack.c.h.b16 %v1062
    %v1140 = vunpack.c.l.b16 %v1063
    %v1141 = vunpack.c.h.b16 %v1063
    %v1142 = vunpack.c.l.b16 %v1064
    %v1143 = vunpack.c.h.b16 %v1064
    %v1144 = vunpack.c.l.b16 %v1065
    %v1145 = vunpack.c.h.b16 %v1065
    %v1146 = vunpack.c.l.b16 %v1066
    %v1147 = vunpack.c.h.b16 %v1066
    %v1148 = vunpack.c.l.b16 %v1067
    %v1149 = vunpack.c.h.b16 %v1067
    %v1150 = vunpack.c.l.b16 %v1068
    %v1151 = vunpack.c.h.b16 %v1068
    %v1152 = vunpack.c.l.b16 %v1069
    %v1153 = vunpack.c.h.b16 %v1069
    %v1154 = vunpack.c.l.b16 %v1070
    %v1155 = vunpack.c.h.b16 %v1070
    %v1156 = vunpack.c.l.b16 %v1071
    %v1157 = vunpack.c.h.b16 %v1071
    %v1158 = vunpack.c.l.b16 %v1072
    %v1159 = vunpack.c.h.b16 %v1072
    %v1160 = vunpack.c.l.b16 %v1073
    %v1161 = vunpack.c.h.b16 %v1073
    %v1162 = vunpack.c.l.b16 %v1074
    %v1163 = vunpack.c.h.b16 %v1074
    %v1164 = vunpack.c.l.b16 %v1075
    %v1165 = vunpack.c.h.b16 %v1075
    %v1166 = vunpack.c.l.b16 %v1076
    %v1167 = vunpack.c.h.b16 %v1076
    %v1168 = vunpack.c.l.b16 %v1077
    %v1169 = vunpack.c.h.b16 %v1077
    %v1170 = vunpack.c.l.b16 %v1078
    %v1171 = vunpack.c.h.b16 %v1078
    %v1172 = vunpack.c.l.b16 %v1079
    %v1173 = vunpack.c.h.b16 %v1079
    %v1174 = vunpack.c.l.b16 %v1080
    %v1175 = vunpack.c.h.b16 %v1080
    %v1176 = vunpack.c.l.b16 %v1081
    %v1177 = vunpack.c.h.b16 %v1081
    %v1178 = vunpack.c.l.b16 %v1082
    %v1179 = vunpack.c.h.b16 %v1082
    %v1180 = vunpack.c.l.b16 %v1083
    %v1181 = vunpack.c.h.b16 %v1083
    %v1182 = vunpack.c.l.b16 %v1084
    %v1183 = vunpack.c.h.b16 %v1084
    %v1184 = vunpack.c.l.b16 %v1085
    %v1185 = vunpack.c.h.b16 %v1085
    %v1186 = vunpack.c.l.b16 %v1086
    %v1187 = vunpack.c.h.b16 %v1086
    %v1188 = vunpack.c.l.b16 %v1087
    %v1189 = vunpack.c.h.b16 %v1087
    %v1190 = vunpack.c.l.b16 %v1088
    %v1191 = vunpack.c.h.b16 %v1088
    %v1192 = vunpack.c.l.b16 %v1089
    %v1193 = vunpack.c.h.b16 %v1089
    %v1194 = vunpack.c.l.b16 %v1090
    %v1195 = vunpack.c.h.b16 %v1090
    %v1196 = vunpack.c.l.b16 %v1091
    %v1197 = vunpack.c.h.b16 %v1091
    %v1198 = vunpack.c.l.b16 %v1092
    %v1199 = vunpack.c.h.b16 %v1092
    %v1200 = vunpack.c.l.b16 %v1093
    %v1201 = vunpack.c.h.b16 %v1093
    %v1202 = vpack.c.b16 %v1140, %v1138
    %v1203 = vpack.c.b16 %v1141, %v1139
    %v1204 = vpack.c.b16 %v1144, %v1142
    %v1205 = vpack.c.b16 %v1145, %v1143
    %v1206 = vpack.c.b16 %v1148, %v1146
    %v1207 = vpack.c.b16 %v1149, %v1147
    %v1208 = vpack.c.b16 %v1152, %v1150
    %v1209 = vpack.c.b16 %v1153, %v1151
    %v1210 = vpack.c.b16 %v1156, %v1154
    %v1211 = vpack.c.b16 %v1157, %v1155
    %v1212 = vpack.c.b16 %v1160, %v1158
    %v1213 = vpack.c.b16 %v1161, %v1159
    %v1214 = vpack.c.b16 %v1164, %v1162
    %v1215 = vpack.c.b16 %v1165, %v1163
    %v1216 = vpack.c.b16 %v1168, %v1166
    %v1217 = vpack.c.b16 %v1169, %v1167
    %v1218 = vpack.c.b16 %v1172, %v1170
    %v1219 = vpack.c.b16 %v1173, %v1171
    %v1220 = vpack.c.b16 %v1176, %v1174
    %v1221 = vpack.c.b16 %v1177, %v1175
    %v1222 = vpack.c.b16 %v1180, %v1178
    %v1223 = vpack.c.b16 %v1181, %v1179
    %v1224 = vpack.c.b16 %v1184, %v1182
    %v1225 = vpack.c.b16 %v1185, %v1183
    %v1226 = vpack.c.b16 %v1188, %v1186
    %v1227 = vpack.c.b16 %v1189, %v1187
    %v1228 = vpack.c.b16 %v1192, %v1190
    %v1229 = vpack.c.b16 %v1193, %v1191
    %v1230 = vpack.c.b16 %v1196, %v1194
    %v1231 = vpack.c.b16 %v1197, %v1195
    %v1232 = vpack.c.b16 %v1200, %v1198
    %v1233 = vpack.c.b16 %v1201, %v1199
    %1266 = vmatprep.subr.bf16.mxu0 %v1203
    %1267 = vmatpush1.bf16.msra.mxu0 %v1202
    %1268 = vmatprep.subr.bf16.mxu0 %v1205
    %1269 = vmatpush1.bf16.msra.mxu0 %v1204
    %1270 = vmatprep.subr.bf16.mxu0 %v1207
    %1271 = vmatpush1.bf16.msra.mxu0 %v1206
    %1272 = vmatprep.subr.bf16.mxu0 %v1209
    %1273 = vmatpush1.bf16.msra.mxu0 %v1208
    %1274 = vmatprep.subr.bf16.mxu0 %v1211
    %1275 = vmatpush1.bf16.msra.mxu0 %v1210
    %1276 = vmatprep.subr.bf16.mxu0 %v1213
    %1277 = vmatpush1.bf16.msra.mxu0 %v1212
    %1278 = vmatprep.subr.bf16.mxu0 %v1215
    %1279 = vmatpush1.bf16.msra.mxu0 %v1214
    %1280 = vmatprep.subr.bf16.mxu0 %v1217
    %1281 = vmatpush1.bf16.msra.mxu0 %v1216
    %1282 = vmatprep.subr.bf16.mxu0 %v1219
    %1283 = vmatpush1.bf16.msra.mxu0 %v1218
    %1284 = vmatprep.subr.bf16.mxu0 %v1221
    %1285 = vmatpush1.bf16.msra.mxu0 %v1220
    %1286 = vmatprep.subr.bf16.mxu0 %v1223
    %1287 = vmatpush1.bf16.msra.mxu0 %v1222
    %1288 = vmatprep.subr.bf16.mxu0 %v1225
    %1289 = vmatpush1.bf16.msra.mxu0 %v1224
    %1290 = vmatprep.subr.bf16.mxu0 %v1227
    %1291 = vmatpush1.bf16.msra.mxu0 %v1226
    %1292 = vmatprep.subr.bf16.mxu0 %v1229
    %1293 = vmatpush1.bf16.msra.mxu0 %v1228
    %1294 = vmatprep.subr.bf16.mxu0 %v1231
    %1295 = vmatpush1.bf16.msra.mxu0 %v1230
    %1296 = vmatprep.subr.bf16.mxu0 %v1233
    %1297 = vmatpush1.bf16.msra.mxu0 %v1232
    %1298 = vmatprep.mubr.bf16.mxu0 %v1061
    %1299 = vmatmul.mubr.bf16.gmra.mrb[0].mxu0 %v1060
    %v1300 = vpop.f32.mrb[0].mxu0
    %v1301 = vadd.f32 %v1099, %v1300
    %v1302 = vpop.f32.mrb[0].mxu0
    %v1303 = vadd.f32 %v1103, %v1302
    %v1304 = vpop.f32.mrb[0].mxu0
    %v1305 = vpop.f32.mrb[0].mxu0
    %1306 = vdwg.mxu0
    %v1309 = vcombine.low %v1301, %v1303
    %v1311 = vunpack.c.l.s4 1983009808
    %v1312 = vunpack.c.0.s8 %v1311
    %v1313 = vlaneseq
    %v1314 = vshrl.u32 %v1313, 7
    %v1315 = vsub.s32 %v1312, %v1314
    %v1316 = vrot.slane %v1309, %v1315
    %1318 = vst [vmem:[#allocation8] sm:$0xf] %v1316
    // Predicated region
    $region34: #{tpu_custom_call.1} parent=1 // pred_check
      _
    $region35: #{tpu_custom_call.1} parent=1 // pred_check_branch
      %1320 = sbr.rel (0) target = $region37
    $region36: #{tpu_custom_call.1} parent=1 // pred_region
      %s1322 = ssub.s32 64, 64
      %1323 = vsyncadd [#allocation4], %s1322
      %s1325 = sshll.u32 [#allocation8], 4
      %s1326 = int_to_ptr.vmem [resolvable:$true] %s1325
      %1328 = dma.vmem_to_hbm [thread:$0]  %s1326, 64, %s5, [#allocation4]
    $region37: #{tpu_custom_call.1} parent=1 // pred_fallthru
      _
    // Predicated region
    $region38: #{tpu_custom_call.1} parent=1 // pred_check
      _
    $region39: #{tpu_custom_call.1} parent=1 // pred_check_branch
      %1330 = sbr.rel (0) target = $region41
    $region40: #{tpu_custom_call.1} parent=1 // pred_region
      %1331 = dma.done [#allocation4], 64
    $region41: #{tpu_custom_call.1} parent=1 // pred_fallthru
      _
    %1332 = vsyncpa [#allocation3], 1
    %1333 = vsyncpa [#allocation6], 1
    %1334 = vsyncpa [#allocation4], 1

</llo_original>
